<compile_context>
chip_gen: v5e
topology: v5e:2x2
jax: 0.10.0
libtpu: 0.0.40
codegen_flags: <defaults>
</compile_context>

<pallas_src>
import functools

import jax
import jax.numpy as jnp
from jax import lax
from jax.experimental import pallas as pl
from jax.experimental.pallas import tpu as pltpu


# ----------------------------------------------------------------------------
# small helpers (glue + in-kernel)
# ----------------------------------------------------------------------------
def _ceil_to(n, m):
    return ((n + m - 1) // m) * m


def _full_spec(shape):
    nd = len(shape)
    return pl.BlockSpec(shape, lambda i, _nd=nd: (0,) * _nd)


def _lrelu(x, slope=0.1):
    return jnp.where(x > 0, x, slope * x)


def _conv_taps(x, w, b, offsets, posm, seg_len):
    """Multi-tap 1-D conv on a batch-folded, lane-padded (C_in, NP) activation.

    x:       (C_in, NP) f32. Valid data lives in contiguous per-batch blocks of
             length `seg_len`; lanes beyond the valid region may hold garbage
             (it never leaks back into valid lanes thanks to the tap mask).
    w:       (C_out, K*C_in) bf16 im2col weight; tap order == `offsets` order.
    b:       (C_out, 1) f32 bias.
    offsets: static tap offsets o_k (tap k reads x[:, t + o_k]).
    posm:    (1, NP) int32 = position-within-segment (t mod seg_len), precomputed.
    seg_len: per-batch-element segment length at this stage.
    """
    assert all(abs(o) < seg_len for o in offsets)
    np_ = x.shape[-1]
    cols = []
    for o in offsets:
        if o == 0:
            cols.append(x)
        else:
            # shifted[:, t] = x[:, t + o] (wrapped); the mask zeroes any tap that
            # would cross a segment boundary or the array edge (PyTorch zero pad).
            shifted = pltpu.roll(x, shift=(-o) % np_, axis=1)
            valid = jnp.logical_and(posm + o >= 0, posm + o < seg_len)
            cols.append(jnp.where(valid, shifted, 0.0))
    xcol = jnp.concatenate(cols, axis=0).astype(jnp.bfloat16)     # (K*C_in, NP)
    y = jnp.dot(w, xcol, preferred_element_type=jnp.float32)      # one MXU matmul
    return y + b


# ConvTranspose1d(k=4, s=2, p=1):  y[n] = sum_k w[k] * x_up[n + 1 - k]
_CONVT_OFFSETS = (1, 0, -1, -2)


# ----------------------------------------------------------------------------
# Kernel 1: simplified text2mel  (alignment length-regulation + decoder proj)
# (embedding lookup is a gather in glue; everything here is channel-major so the
#  time axis sits on lanes)
# ----------------------------------------------------------------------------
def text2mel_kernel(enc_ref, align_ref, wdec_t_ref, bdec_ref, mel_ref):
    # enc_ref:    (B, C, T_text)      bf16   gathered token embeddings
    # align_ref:  (B, T_text, T_feats) bf16  hard alignment (0/1)
    # wdec_t_ref: (C, C)              bf16   decoder projection, pre-transposed
    # bdec_ref:   (C, 1)              f32
    # mel_ref:    (B, C, T_feats)     f32
    wdec_t = wdec_t_ref[...]
    bdec = bdec_ref[...]
    for b in range(enc_ref.shape[0]):          # static unroll, single invocation
        feat = jnp.dot(enc_ref[b], align_ref[b],
                       preferred_element_type=jnp.float32)          # (C, T_feats)
        mel = jnp.dot(wdec_t, feat.astype(jnp.bfloat16),
                      preferred_element_type=jnp.float32)           # (C, T_feats)
        mel_ref[b] = mel + bdec


def run_text2mel(enc_t, align, wdec_t, bdec):
    B, C, _ = enc_t.shape
    T_feats = align.shape[-1]
    out_shape = (B, C, T_feats)
    args = (enc_t, align, wdec_t, bdec)
    return pl.pallas_call(
        text2mel_kernel,
        out_shape=jax.ShapeDtypeStruct(out_shape, jnp.float32),
        grid=(1,),
        in_specs=[_full_spec(a.shape) for a in args],
        out_specs=_full_spec(out_shape),
    )(*args)


# ----------------------------------------------------------------------------
# Kernel 2: mel2wav (AudioUpsampler / HiFiGAN-style generator)
# Batch folded along the time axis, single kernel invocation.
# ----------------------------------------------------------------------------
def mel2wav_kernel(seg_ref,
                   w_pre_ref, w_up1_ref, w_r1a_ref, w_r1b_ref,
                   w_up2_ref, w_r2a_ref, w_r2b_ref, w_post_ref,
                   b_all_ref, r1_ref, r2_ref,
                   pos0_ref, pos1_ref, pos2_ref,
                   wav_ref, *, seg_len):
    c0 = w_pre_ref.shape[0]
    c1 = w_up1_ref.shape[0]
    c2 = w_up2_ref.shape[0]

    # unpack the packed bias vector (static, sublane-aligned slices)
    b_all = b_all_ref[...]
    o = 0
    b_pre = b_all[o:o + c0]; o += c0
    b_up1 = b_all[o:o + c1]; o += c1
    b_r1a = b_all[o:o + c1]; o += c1
    b_r1b = b_all[o:o + c1]; o += c1
    b_up2 = b_all[o:o + c2]; o += c2
    b_r2a = b_all[o:o + c2]; o += c2
    b_r2b = b_all[o:o + c2]; o += c2
    b_post = b_all[o:o + 1]

    pos0 = pos0_ref[...]
    pos1 = pos1_ref[...]
    pos2 = pos2_ref[...]

    x = seg_ref[...]                                                 # (C_mel, NP0) f32

    # conv_pre: Conv1d(C_mel -> C0, k=7, pad=3)
    x = _conv_taps(x, w_pre_ref[...], b_pre, tuple(range(-3, 4)), pos0, seg_len)

    # ---- upsample stage 1: lrelu -> ConvTranspose1d(s=2,k=4,p=1) -> residual block ----
    x = _lrelu(x)
    xup = jnp.dot(x.astype(jnp.bfloat16), r1_ref[...],
                  preferred_element_type=jnp.float32)                # zero-stuffed x2 (C0, NP1)
    sl = 2 * seg_len
    x = _conv_taps(xup, w_up1_ref[...], b_up1, _CONVT_OFFSETS, pos1, sl)   # (C1, NP1)
    xt = _conv_taps(_lrelu(x), w_r1a_ref[...], b_r1a, (-1, 0, 1), pos1, sl)
    xt = _conv_taps(_lrelu(xt), w_r1b_ref[...], b_r1b, (-1, 0, 1), pos1, sl)
    x = x + xt

    # ---- upsample stage 2: lrelu -> ConvTranspose1d(s=2,k=4,p=1) -> residual block ----
    x = _lrelu(x)
    xup = jnp.dot(x.astype(jnp.bfloat16), r2_ref[...],
                  preferred_element_type=jnp.float32)                # (C1, NP2)
    sl = 4 * seg_len
    x = _conv_taps(xup, w_up2_ref[...], b_up2, _CONVT_OFFSETS, pos2, sl)   # (C2, NP2)
    xt = _conv_taps(_lrelu(x), w_r2a_ref[...], b_r2a, (-1, 0, 1), pos2, sl)
    xt = _conv_taps(_lrelu(xt), w_r2b_ref[...], b_r2b, (-1, 0, 1), pos2, sl)
    x = x + xt

    # ---- conv_post (k=7) + tanh ----
    x = _lrelu(x)
    x = _conv_taps(x, w_post_ref[...], b_post, tuple(range(-3, 4)), pos2, sl)  # (1, NP2)
    wav_ref[...] = jnp.tanh(x)


def _spread_matrix(n_valid_in, np_in, np_out):
    # R[t, m] = 1 iff m == 2*t and t < n_valid_in  (zero-stuffing x2 upsample).
    # Batch-fold preserving: 2*(b*L + j) = b*(2L) + 2j, so m = 2t works as-is.
    t = jnp.arange(np_in, dtype=jnp.int32)[:, None]
    m = jnp.arange(np_out, dtype=jnp.int32)[None, :]
    r = jnp.logical_and(m == 2 * t, t < n_valid_in)
    return r.astype(jnp.bfloat16)


def run_mel2wav(segments, gp):
    """segments: (B, C_mel, T_seg) f32  ->  (B, 1, 4*T_seg) f32 waveform."""
    B, c_mel, t_seg = segments.shape
    n0 = B * t_seg
    np0 = _ceil_to(n0, 128)
    np1 = _ceil_to(2 * n0, 128)
    np2 = _ceil_to(4 * n0, 128)

    # fold batch along time (lanes) and pad lanes to a multiple of 128
    seg_flat = jnp.transpose(segments, (1, 0, 2)).reshape(c_mel, n0)
    seg_flat = jnp.pad(seg_flat, ((0, 0), (0, np0 - n0)))

    r1 = _spread_matrix(n0, np0, np1)
    r2 = _spread_matrix(2 * n0, np1, np2)
    pos0 = (jnp.arange(np0, dtype=jnp.int32) % t_seg)[None, :]
    pos1 = (jnp.arange(np1, dtype=jnp.int32) % (2 * t_seg))[None, :]
    pos2 = (jnp.arange(np2, dtype=jnp.int32) % (4 * t_seg))[None, :]

    weights = [gp[n] for n in ("w_pre", "w_up1", "w_r1a", "w_r1b",
                               "w_up2", "w_r2a", "w_r2b", "w_post")]
    args = [seg_flat] + weights + [gp["b_all"], r1, r2, pos0, pos1, pos2]
    wav_flat = pl.pallas_call(
        functools.partial(mel2wav_kernel, seg_len=t_seg),
        out_shape=jax.ShapeDtypeStruct((1, np2), jnp.float32),
        grid=(1,),
        in_specs=[_full_spec(a.shape) for a in args],
        out_specs=_full_spec((1, np2)),
    )(*args)
    # un-fold: [elem0 4T | elem1 4T | ... | pad]  ->  (B, 1, 4*T_seg)
    return wav_flat[:, : 4 * n0].reshape(B, 1, 4 * t_seg)


# ----------------------------------------------------------------------------
# Glue: parameter packing, random-segment slicing, full forward
# ----------------------------------------------------------------------------
def _im2col_w(w):
    # (K, C_out, C_in) per-tap weights -> (C_out, K*C_in) bf16, tap order k=0..K-1
    return jnp.concatenate([w[k] for k in range(w.shape[0])], axis=1).astype(jnp.bfloat16)


def pack_generator_params(p):
    b_all = jnp.concatenate(
        [p["b_pre"], p["b_up1"], p["b_r1a"], p["b_r1b"],
         p["b_up2"], p["b_r2a"], p["b_r2b"], p["b_post"]], axis=0).astype(jnp.float32)
    return {
        "w_pre": _im2col_w(p["w_pre"]), "w_up1": _im2col_w(p["w_up1"]),
        "w_r1a": _im2col_w(p["w_r1a"]), "w_r1b": _im2col_w(p["w_r1b"]),
        "w_up2": _im2col_w(p["w_up2"]), "w_r2a": _im2col_w(p["w_r2a"]),
        "w_r2b": _im2col_w(p["w_r2b"]), "w_post": _im2col_w(p["w_post"]),
        "b_all": b_all,
    }


def get_random_segments(x, x_lengths, segment_size, key):
    # x: (B, C, T) -- identical semantics to the PyTorch helper.
    # NOTE: sequences shorter than segment_size silently slice from 0 (same as PyTorch).
    B = x.shape[0]
    max_start = jnp.maximum(x_lengths - segment_size, 0)
    u = jax.random.uniform(key, (B,))
    start = jnp.minimum((u * (max_start + 1).astype(jnp.float32)).astype(jnp.int32),
                        max_start)

    def slice_one(xb, sb):
        return lax.dynamic_slice(xb, (0, sb), (xb.shape[0], segment_size))

    return jax.vmap(slice_one)(x, start), start


def text2wav_forward(text, text_lengths, feats, feats_lengths, duration, params,
                     segment_size, seg_key):
    """Mirrors Text2Wav.forward for version='fastspeech2' (simplified submodules)."""
    # --- text2mel: embedding gather (glue) + alignment regulation + proj (kernel)
    enc_t = jnp.transpose(jnp.take(params["emb"], text, axis=0), (0, 2, 1))   # (B, C, T_text)
    mel_t = run_text2mel(enc_t.astype(jnp.bfloat16),
                         duration.astype(jnp.bfloat16),                        # (B, T_text, T_feats)
                         params["w_dec"].T.astype(jnp.bfloat16),
                         params["b_dec"])                                      # (B, C, T_feats)
    out_feats = jnp.transpose(mel_t, (0, 2, 1))                                # (B, T_feats, C)

    # --- get_random_segments on (B, C, T_feats); mel_t is already channel-major
    out_segments, start_idxs = get_random_segments(mel_t, feats_lengths,
                                                   segment_size, seg_key)

    # --- mel2wav generator on the segments
    gp = pack_generator_params(params)
    out_wavs = run_mel2wav(out_segments, gp)                                   # (B, 1, 4*segment)

    outputs = (out_wavs, out_segments, None, out_feats)
    extra_inputs = None
    return outputs, extra_inputs, start_idxs


# ----------------------------------------------------------------------------
# Deterministic parameter construction (PyTorch-style layouts; packed in glue).
# Conv weights are per-tap (K, C_out, C_in); transposed-conv taps follow the
# convention w[k] == ConvTranspose1d.weight[:, :, k].T  (same as validated before).
# ----------------------------------------------------------------------------
def make_params(key, vocabs, aux_channels):
    C0, C1, C2 = 32, 16, 8     # generator channels: pre -> up1 -> up2
    ks = jax.random.split(key, 20)
    s = 0.1

    def n(k, shape):
        return (jax.random.normal(k, shape, jnp.float32) * s).astype(jnp.float32)

    return {
        # text2mel
        "emb":   n(ks[0], (vocabs, aux_channels)),
        "w_dec": n(ks[1], (aux_channels, aux_channels)),
        "b_dec": n(ks[2], (aux_channels, 1)),
        # mel2wav generator
        "w_pre": n(ks[3], (7, C0, aux_channels)), "b_pre": n(ks[4], (C0, 1)),
        "w_up1": n(ks[5], (4, C1, C0)),           "b_up1": n(ks[6], (C1, 1)),
        "w_r1a": n(ks[7], (3, C1, C1)),           "b_r1a": n(ks[8], (C1, 1)),
        "w_r1b": n(ks[9], (3, C1, C1)),           "b_r1b": n(ks[10], (C1, 1)),
        "w_up2": n(ks[11], (4, C2, C1)),          "b_up2": n(ks[12], (C2, 1)),
        "w_r2a": n(ks[13], (3, C2, C2)),          "b_r2a": n(ks[14], (C2, 1)),
        "w_r2b": n(ks[15], (3, C2, C2)),          "b_r2b": n(ks[16], (C2, 1)),
        "w_post": n(ks[17], (7, 1, C2)),          "b_post": n(ks[18], (1, 1)),
    }


# ----------------------------------------------------------------------------
if __name__ == "__main__":
    B, T_text, T_feats = 2, 8, 16
    vocabs, aux_channels = 11, 16
    segment_size = 8                       # mel2wav_params['segment_size']
    upsample_factor = 4                    # 2 upsample stages of stride 2

    root = jax.random.PRNGKey(0)
    k_par, k_txt, k_feat, k_seg = jax.random.split(root, 4)

    params = make_params(k_par, vocabs, aux_channels)

    text = jax.random.randint(k_txt, (B, T_text), 0, vocabs, dtype=jnp.int32)
    text_lengths = jnp.array([T_text, T_text - 2], dtype=jnp.int32)
    feats = jax.random.normal(k_feat, (B, T_feats, aux_channels), jnp.float32)
    feats_lengths = jnp.array([T_feats, T_feats - 4], dtype=jnp.int32)

    # unsupervised-mode "duration" = alignment (B, T_text, T_feats): hard monotonic map
    rep = T_feats // T_text
    ti = jnp.arange(T_text)[:, None]
    fj = jnp.arange(T_feats)[None, :]
    duration = jnp.broadcast_to((fj // rep == ti).astype(jnp.float32),
                                (B, T_text, T_feats))

    outputs, extra_inputs, start_idxs = text2wav_forward(
        text, text_lengths, feats, feats_lengths, duration, params,
        segment_size, k_seg)

    out_wavs, out_segments, _, out_feats = outputs
    out_wavs = jax.block_until_ready(out_wavs)
    out_segments = jax.block_until_ready(out_segments)
    out_feats = jax.block_until_ready(out_feats)
    start_idxs = jax.block_until_ready(start_idxs)

    assert out_feats.shape == (B, T_feats, aux_channels)
    assert out_segments.shape == (B, aux_channels, segment_size)
    assert out_wavs.shape == (B, 1, segment_size * upsample_factor)
    assert bool(jnp.all(jnp.isfinite(out_wavs)))
    assert bool(jnp.all(jnp.abs(out_wavs) <= 1.0))

    print("KERNEL_OK")
</pallas_src>

<mosaic_0001>
module attributes {stable_mosaic.version = 11 : i64} {
  func.func @text2mel_kernel(%arg0: i32, %arg1: memref<2x16x8xbf16, #tpu.memory_space<vmem>>, %arg2: memref<2x8x16xbf16, #tpu.memory_space<vmem>>, %arg3: memref<16x16xbf16, #tpu.memory_space<vmem>>, %arg4: memref<16x1xf32, #tpu.memory_space<vmem>>, %arg5: memref<2x16x16xf32, #tpu.memory_space<vmem>>) attributes {dimension_semantics = [#tpu.dimension_semantics<arbitrary>], iteration_bounds = array<i64: 1>, scalar_prefetch = 0 : i64, scratch_operands = 0 : i64, tpu.core_type = #tpu.core_type<tc>, window_params = [{pipeline_mode = #tpu.pipeline_mode<synchronous>, transform_indices = @transform_0, window_bounds = array<i64: 2, 16, 8>}, {pipeline_mode = #tpu.pipeline_mode<synchronous>, transform_indices = @transform_1, window_bounds = array<i64: 2, 8, 16>}, {pipeline_mode = #tpu.pipeline_mode<synchronous>, transform_indices = @transform_2, window_bounds = array<i64: 16, 16>}, {pipeline_mode = #tpu.pipeline_mode<synchronous>, transform_indices = @transform_3, window_bounds = array<i64: 16, 1>}, {pipeline_mode = #tpu.pipeline_mode<synchronous>, transform_indices = @transform_4, window_bounds = array<i64: 2, 16, 16>}]} {
    %c0 = arith.constant 0 : index
    %c0_0 = arith.constant 0 : index
    %0 = vector.load %arg3[%c0, %c0_0] : memref<16x16xbf16, #tpu.memory_space<vmem>>, vector<16x16xbf16>
    %c0_1 = arith.constant 0 : index
    %c0_2 = arith.constant 0 : index
    %1 = vector.load %arg4[%c0_1, %c0_2] : memref<16x1xf32, #tpu.memory_space<vmem>>, vector<16x1xf32>
    %c0_3 = arith.constant 0 : index
    %c0_4 = arith.constant 0 : index
    %c0_5 = arith.constant 0 : index
    %2 = vector.load %arg1[%c0_3, %c0_4, %c0_5] : memref<2x16x8xbf16, #tpu.memory_space<vmem>>, vector<1x16x8xbf16>
    %3 = vector.shape_cast %2 : vector<1x16x8xbf16> to vector<16x8xbf16>
    %c0_6 = arith.constant 0 : index
    %c0_7 = arith.constant 0 : index
    %c0_8 = arith.constant 0 : index
    %4 = vector.load %arg2[%c0_6, %c0_7, %c0_8] : memref<2x8x16xbf16, #tpu.memory_space<vmem>>, vector<1x8x16xbf16>
    %5 = vector.shape_cast %4 : vector<1x8x16xbf16> to vector<8x16xbf16>
    %cst = arith.constant dense<0.000000e+00> : vector<16x16xf32>
    %6 = tpu.matmul %3, %5, %cst {dimension_numbers = #tpu.dot_dimension_numbers<[1], [0], [0], [1], [0, 0, 1, 1], [], []>} : vector<16x8xbf16>, vector<8x16xbf16>, vector<16x16xf32> -> vector<16x16xf32>
    %7 = arith.truncf %6 : vector<16x16xf32> to vector<16x16xbf16>
    %cst_9 = arith.constant dense<0.000000e+00> : vector<16x16xf32>
    %8 = tpu.matmul %0, %7, %cst_9 {dimension_numbers = #tpu.dot_dimension_numbers<[1], [0], [0], [1], [0, 0, 1, 1], [], []>} : vector<16x16xbf16>, vector<16x16xbf16>, vector<16x16xf32> -> vector<16x16xf32>
    %9 = vector.broadcast %1 : vector<16x1xf32> to vector<16x16xf32>
    %10 = arith.addf %8, %9 : vector<16x16xf32>
    %c0_10 = arith.constant 0 : index
    %c0_11 = arith.constant 0 : index
    %c0_12 = arith.constant 0 : index
    %11 = vector.load %arg5[%c0_10, %c0_11, %c0_12] : memref<2x16x16xf32, #tpu.memory_space<vmem>>, vector<1x16x16xf32>
    %12 = vector.shape_cast %11 : vector<1x16x16xf32> to vector<16x16xf32>
    %13 = vector.shape_cast %10 : vector<16x16xf32> to vector<1x16x16xf32>
    tpu.vector_store %arg5[%c0_10, %c0_11, %c0_12], %13 {strides = array<i32>} : memref<2x16x16xf32, #tpu.memory_space<vmem>>, vector<1x16x16xf32>,
    %c1 = arith.constant 1 : index
    %c0_13 = arith.constant 0 : index
    %c0_14 = arith.constant 0 : index
    %14 = vector.load %arg1[%c1, %c0_13, %c0_14] : memref<2x16x8xbf16, #tpu.memory_space<vmem>>, vector<1x16x8xbf16>
    %15 = vector.shape_cast %14 : vector<1x16x8xbf16> to vector<16x8xbf16>
    %c1_15 = arith.constant 1 : index
    %c0_16 = arith.constant 0 : index
    %c0_17 = arith.constant 0 : index
    %16 = vector.load %arg2[%c1_15, %c0_16, %c0_17] : memref<2x8x16xbf16, #tpu.memory_space<vmem>>, vector<1x8x16xbf16>
    %17 = vector.shape_cast %16 : vector<1x8x16xbf16> to vector<8x16xbf16>
    %cst_18 = arith.constant dense<0.000000e+00> : vector<16x16xf32>
    %18 = tpu.matmul %15, %17, %cst_18 {dimension_numbers = #tpu.dot_dimension_numbers<[1], [0], [0], [1], [0, 0, 1, 1], [], []>} : vector<16x8xbf16>, vector<8x16xbf16>, vector<16x16xf32> -> vector<16x16xf32>
    %19 = arith.truncf %18 : vector<16x16xf32> to vector<16x16xbf16>
    %cst_19 = arith.constant dense<0.000000e+00> : vector<16x16xf32>
    %20 = tpu.matmul %0, %19, %cst_19 {dimension_numbers = #tpu.dot_dimension_numbers<[1], [0], [0], [1], [0, 0, 1, 1], [], []>} : vector<16x16xbf16>, vector<16x16xbf16>, vector<16x16xf32> -> vector<16x16xf32>
    %21 = vector.broadcast %1 : vector<16x1xf32> to vector<16x16xf32>
    %22 = arith.addf %20, %21 : vector<16x16xf32>
    %c1_20 = arith.constant 1 : index
    %c0_21 = arith.constant 0 : index
    %c0_22 = arith.constant 0 : index
    %23 = vector.load %arg5[%c1_20, %c0_21, %c0_22] : memref<2x16x16xf32, #tpu.memory_space<vmem>>, vector<1x16x16xf32>
    %24 = vector.shape_cast %23 : vector<1x16x16xf32> to vector<16x16xf32>
    %25 = vector.shape_cast %22 : vector<16x16xf32> to vector<1x16x16xf32>
    tpu.vector_store %arg5[%c1_20, %c0_21, %c0_22], %25 {strides = array<i32>} : memref<2x16x16xf32, #tpu.memory_space<vmem>>, vector<1x16x16xf32>,
    return
  }
  func.func @transform_0(%arg0: i32) -> (i32, i32, i32) {
    %c0_i32 = arith.constant 0 : i32
    %c0_i32_0 = arith.constant 0 : i32
    %c0_i32_1 = arith.constant 0 : i32
    %c0_i32_2 = arith.constant 0 : i32
    return %c0_i32, %c0_i32_0, %c0_i32_1 : i32, i32, i32
  }
  func.func @transform_1(%arg0: i32) -> (i32, i32, i32) {
    %c0_i32 = arith.constant 0 : i32
    %c0_i32_0 = arith.constant 0 : i32
    %c0_i32_1 = arith.constant 0 : i32
    %c0_i32_2 = arith.constant 0 : i32
    return %c0_i32, %c0_i32_0, %c0_i32_1 : i32, i32, i32
  }
  func.func @transform_2(%arg0: i32) -> (i32, i32) {
    %c0_i32 = arith.constant 0 : i32
    %c0_i32_0 = arith.constant 0 : i32
    %c0_i32_1 = arith.constant 0 : i32
    return %c0_i32, %c0_i32_0 : i32, i32
  }
  func.func @transform_3(%arg0: i32) -> (i32, i32) {
    %c0_i32 = arith.constant 0 : i32
    %c0_i32_0 = arith.constant 0 : i32
    %c0_i32_1 = arith.constant 0 : i32
    return %c0_i32, %c0_i32_0 : i32, i32
  }
  func.func @transform_4(%arg0: i32) -> (i32, i32, i32) {
    %c0_i32 = arith.constant 0 : i32
    %c0_i32_0 = arith.constant 0 : i32
    %c0_i32_1 = arith.constant 0 : i32
    %c0_i32_2 = arith.constant 0 : i32
    return %c0_i32, %c0_i32_0, %c0_i32_1 : i32, i32, i32
  }
}

</mosaic_0001>

<llo_original>
// kernel: tpu_custom_call.1
$region0: #{tpu_custom_call.1}
  #allocation0 [shape = 'u32[]', space=smem, size = 0x4, offset = 0x4, fixed_abs, tag = 'smem constant byte address 0x4 - core index']
  #allocation1 [shape = 'u32[72,128]{1,0:T(1,128)}', space=vmem, size = 0x9000, scoped, tag = 'internal scratch']
  %s0 = inlined_call_operand.vmem [shape: bf16[2,16,8], index: 0, kind: input, shape index: {}]
  %s1 = inlined_call_operand.vmem [shape: bf16[2,8,16], index: 1, kind: input, shape index: {}]
  %s2 = inlined_call_operand.vmem [shape: bf16[16,16], index: 2, kind: input, shape index: {}]
  %s3 = inlined_call_operand.vmem [shape: f32[16,1], index: 3, kind: input, shape index: {}]
  %s4 = inlined_call_operand.hbm [shape: f32[2,16,16], index: 4, kind: output, shape index: {}]
  %s5 = sld [smem:[#allocation0]]
  $region26: #{tpu_custom_call.1} parent=0
    _
  %s7 = ssub.s32 1, %s5
  %s8 = scalar_select 0, %s7, %s5
  $region1: #{tpu_custom_call.1} parent=0
    #allocation2 [shape = 'u8[16384]{0}', space=vmem, size = 0x4000, scoped, tag = 'output window, operand 0, single buffered']
    #allocation3 [shape = 's32[1]{0}', space=sflag, size = 0x4, scoped, tag = 'scoped memory for tpu_custom_call.1']
    %9 = vsyncpa [#allocation3], 0
    // Predicated region
    $region2: #{tpu_custom_call.1} parent=1 // pred_check
      _
    $region3: #{tpu_custom_call.1} parent=1 // pred_check_branch
      %11 = sbr.rel (0) target = $region5
    $region4: #{tpu_custom_call.1} parent=1 // pred_region
      _
    $region5: #{tpu_custom_call.1} parent=1 // pred_fallthru
      _
    // Predicated region
    $region6: #{tpu_custom_call.1} parent=1 // pred_check
      _
    $region7: #{tpu_custom_call.1} parent=1 // pred_check_branch
      %13 = sbr.rel (0) target = $region9
    $region8: #{tpu_custom_call.1} parent=1 // pred_region
      _
    $region9: #{tpu_custom_call.1} parent=1 // pred_fallthru
      _
    // Predicated region
    $region10: #{tpu_custom_call.1} parent=1 // pred_check
      _
    $region11: #{tpu_custom_call.1} parent=1 // pred_check_branch
      %15 = sbr.rel (0) target = $region13
    $region12: #{tpu_custom_call.1} parent=1 // pred_region
      _
    $region13: #{tpu_custom_call.1} parent=1 // pred_fallthru
      _
    // Predicated region
    $region14: #{tpu_custom_call.1} parent=1 // pred_check
      _
    $region15: #{tpu_custom_call.1} parent=1 // pred_check_branch
      %17 = sbr.rel (0) target = $region17
    $region16: #{tpu_custom_call.1} parent=1 // pred_region
      _
    $region17: #{tpu_custom_call.1} parent=1 // pred_fallthru
      _
    %v19 = vld [vmem:[%s2] sm:$0xf]
    %v20 = vld [vmem:[%s2 + $0x4] sm:$0xf]
    %v21 = vld [vmem:[%s3] sm:$0xff]
    %v22 = vld [vmem:[%s3 + $0x8] sm:$0xff]
    %v23 = vld [vmem:[%s0] sm:$0xf]
    %v24 = vld [vmem:[%s0 + $0x4] sm:$0xf]
    %v25 = vld [vmem:[%s1] sm:$0xf]
    %v28 = vunpack.c.l.b16 %v23
    %v29 = vunpack.c.l.b16 %v24
    %v30 = vpack.c.b16 %v29, %v28
    %vm31 = vcmask 64512
    %v33 = vsel %vm31, %v30, 0
    %vm35 = vcmask 1043456
    %v37 = vsel %vm35, %v25, 0
    %39 = vmatpush.bf16.msra.mxu0 0
    %40 = vmatpush.bf16.msra.mxu0 0
    %41 = vmatpush.bf16.msra.mxu0 0
    %42 = vmatpush.bf16.msra.mxu0 0
    %43 = vmatpush.bf16.msra.mxu0 0
    %44 = vmatpush.bf16.msra.mxu0 0
    %45 = vmatpush.bf16.msra.mxu0 0
    %46 = vmatpush.bf16.msra.mxu0 %v37
    %47 = vmatmul.bf16.gmra.mxu0 %v33
    %v48 = vpop.f32.mrf.mxu0
    %v49 = vadd.f32 0.0, %v48
    %v50 = vpop.f32.mrf.mxu0
    %v51 = vadd.f32 0.0, %v50
    %52 = vdwg.mxu0
    %v53 = vpack.c.bf16 %v51, %v49
    %55 = vset.pattern.permute.xlu0 0
    %56 = vperm.xlu0 %55, %v21
    %v57 = vpop.permute.xlu0 %56
    %60 = vset.pattern.permute.xlu0 0
    %61 = vperm.xlu0 %60, %v22
    %v62 = vpop.permute.xlu0 %61
    %v66 = vunpack.c.l.b16 %v19
    %v67 = vunpack.c.l.b16 %v20
    %v68 = vpack.c.b16 %v67, %v66
    %vm69 = vcmask 130048
    %v71 = vsel %vm69, %v68, 0
    %73 = vmatpush.bf16.msra.mxu0 0
    %74 = vmatpush.bf16.msra.mxu0 0
    %75 = vmatpush.bf16.msra.mxu0 0
    %76 = vmatpush.bf16.msra.mxu0 0
    %77 = vmatpush.bf16.msra.mxu0 0
    %78 = vmatpush.bf16.msra.mxu0 0
    %79 = vmatpush.bf16.msra.mxu0 0
    %80 = vmatpush.bf16.msra.mxu0 %v53
    %81 = vmatmul.bf16.gmra.mxu0 %v71
    %v82 = vpop.f32.mrf.mxu0
    %v83 = vadd.f32 %v57, %v82
    %v84 = vpop.f32.mrf.mxu0
    %v85 = vadd.f32 %v62, %v84
    %86 = vdwg.mxu0
    %87 = vst.msk [vmem:[#allocation2] sm:$0xff] %vm69, %v83
    %88 = vst.msk [vmem:[#allocation2 + $0x8] sm:$0xff] %vm69, %v85
    %s89 = scalar_lea.vmem %s0, 8
    %v90 = vld [vmem:[%s89] sm:$0xf]
    %v91 = vld [vmem:[%s89 + $0x4] sm:$0xf]
    %s92 = scalar_lea.vmem %s1, 4
    %v93 = vld [vmem:[%s92] sm:$0xf]
    %v96 = vunpack.c.l.b16 %v90
    %v97 = vunpack.c.l.b16 %v91
    %v98 = vpack.c.b16 %v97, %v96
    %v100 = vsel %vm31, %v98, 0
    %v103 = vsel %vm35, %v93, 0
    %105 = vmatpush.bf16.msra.mxu0 0
    %106 = vmatpush.bf16.msra.mxu0 0
    %107 = vmatpush.bf16.msra.mxu0 0
    %108 = vmatpush.bf16.msra.mxu0 0
    %109 = vmatpush.bf16.msra.mxu0 0
    %110 = vmatpush.bf16.msra.mxu0 0
    %111 = vmatpush.bf16.msra.mxu0 0
    %112 = vmatpush.bf16.msra.mxu0 %v103
    %113 = vmatmul.bf16.gmra.mxu0 %v100
    %v114 = vpop.f32.mrf.mxu0
    %v115 = vadd.f32 0.0, %v114
    %v116 = vpop.f32.mrf.mxu0
    %v117 = vadd.f32 0.0, %v116
    %118 = vdwg.mxu0
    %v119 = vpack.c.bf16 %v117, %v115
    %120 = vmatpush.bf16.msra.mxu0 0
    %121 = vmatpush.bf16.msra.mxu0 0
    %122 = vmatpush.bf16.msra.mxu0 0
    %123 = vmatpush.bf16.msra.mxu0 0
    %124 = vmatpush.bf16.msra.mxu0 0
    %125 = vmatpush.bf16.msra.mxu0 0
    %126 = vmatpush.bf16.msra.mxu0 0
    %127 = vmatpush.bf16.msra.mxu0 %v119
    %128 = vmatmul.bf16.gmra.mxu0 %v71
    %v129 = vpop.f32.mrf.mxu0
    %v130 = vadd.f32 %v57, %v129
    %v131 = vpop.f32.mrf.mxu0
    %v132 = vadd.f32 %v62, %v131
    %133 = vdwg.mxu0
    %s134 = scalar_lea.vmem [#allocation2], 16
    %135 = vst.msk [vmem:[%s134] sm:$0xff] %vm69, %v130
    %136 = vst.msk [vmem:[%s134 + $0x8] sm:$0xff] %vm69, %v132
    // Predicated region
    $region18: #{tpu_custom_call.1} parent=1 // pred_check
      _
    $region19: #{tpu_custom_call.1} parent=1 // pred_check_branch
      %138 = sbr.rel (0) target = $region21
    $region20: #{tpu_custom_call.1} parent=1 // pred_region
      %140 = vsyncadd [#allocation3], 0
      %s141 = sshll.u32 [#allocation2], 4
      %s142 = int_to_ptr.vmem [resolvable:$true] %s141
      %s143 = sshll.u32 %s4, 4
      %s144 = int_to_ptr.hbm [resolvable:$true] %s143
      %149 = dma.vmem_to_hbm [thread:$0]  %s142, 512, %s144, [#allocation3], 128, 128, 8
    $region21: #{tpu_custom_call.1} parent=1 // pred_fallthru
      _
    // Predicated region
    $region22: #{tpu_custom_call.1} parent=1 // pred_check
      _
    $region23: #{tpu_custom_call.1} parent=1 // pred_check_branch
      %151 = sbr.rel (0) target = $region25
    $region24: #{tpu_custom_call.1} parent=1 // pred_region
      %153 = dma.done [#allocation3], 512
    $region25: #{tpu_custom_call.1} parent=1 // pred_fallthru
      _
    %154 = vsyncpa [#allocation3], 1

</llo_original>
